<compile_context>
chip_gen: v6e
topology: v6e:2x2x1
jax: 0.10.0
libtpu: 0.0.40
codegen_flags: <defaults>
</compile_context>

<pallas_src>
import functools

import jax
import jax.numpy as jnp
from jax.experimental import pallas as pl
from jax.experimental.pallas import tpu as pltpu

_LANE = 128
_SUBLANE_BF16 = 16
_MAX_BATCH_TILE = 256                 # 256-row MXU on v6e/v7x; fine on v5e too
_VMEM_CAP_BYTES = 48 * 1024 * 1024    # headroom under v7x's 64 MiB physical VMEM


def _round_up(x, m):
    return ((x + m - 1) // m) * m


def _tk_eff(tk, K):
    return min(_round_up(tk, _LANE), _round_up(K, _LANE))


def _classifier_kernel(hid_ref, x_ref, w_enc_ref, b_enc_ref, w_head_ref,
                       b_head_ref, out_ref, acc_ref):
    """Fused encoder + selected classification head.

    hid_ref:    SMEM scalar-prefetch ref holding the selected head index
                (consumed by the index_maps; unused in the body).
    x_ref:      [tm, tk]   bf16  flattened-pixel tile
    w_enc_ref:  [tk, Dp]   bf16  encoder weight tile (K reduction)
    b_enc_ref:  [1, Dp]    f32   encoder bias
    w_head_ref: [Dp, Cp]   bf16  selected head weight (head dim squeezed)
    b_head_ref: [1, Cp]    f32   selected head bias   (head dim squeezed)
    out_ref:    [tm, Cp]   f32   logits
    acc_ref:    [tm, Dp]   f32   VMEM accumulator over the K reduction
    """
    k = pl.program_id(1)

    @pl.when(k == 0)
    def _():
        acc_ref[...] = jnp.zeros_like(acc_ref)

    # Encoder matmul: bf16 inputs, f32 accumulation on the MXU.
    acc_ref[...] += jnp.dot(x_ref[...], w_enc_ref[...],
                            preferred_element_type=jnp.float32)

    @pl.when(k == pl.num_programs(1) - 1)
    def _():
        # f32 epilogue: bias + GELU, then the selected head's matmul.
        # TODO(synk): PyTorch nn.GELU defaults to the exact erf form; the tanh
        #             approximation is used here (intentional, matches ref).
        feat = acc_ref[...] + b_enc_ref[...]
        feat = jax.nn.gelu(feat, approximate=True)
        logits = jnp.dot(feat.astype(w_head_ref.dtype), w_head_ref[...],
                         preferred_element_type=jnp.float32)
        out_ref[...] = (logits + b_head_ref[...]).astype(out_ref.dtype)


def prepare_classifier_params(w_enc, b_enc, w_heads, b_heads, *, tk=2048):
    """One-time weight prep: pad to lane-dense shapes and cast to bf16.

    Call ONCE at module-init time (analogous to constructing the nn.Module),
    NOT per forward call: re-padding per call reads the f32 weights, writes a
    bf16 copy, then the kernel reads it again -- ~4x the HBM traffic of the
    (bandwidth-bound) kernel itself at real encoder sizes.
    """
    K, D = w_enc.shape
    num_heads, _, num_classes = w_heads.shape
    D_pad = _round_up(D, _LANE)
    C_pad = _round_up(num_classes, _LANE)
    K_pad = _round_up(K, _tk_eff(tk, K))

    w_enc_p = jnp.pad(w_enc.astype(jnp.bfloat16),
                      ((0, K_pad - K), (0, D_pad - D)))
    b_enc_p = jnp.pad(b_enc.reshape(1, D).astype(jnp.float32),
                      ((0, 0), (0, D_pad - D)))
    w_heads_p = jnp.pad(w_heads.astype(jnp.bfloat16),
                        ((0, 0), (0, D_pad - D), (0, C_pad - num_classes)))
    b_heads_p = jnp.pad(
        b_heads.reshape(num_heads, 1, num_classes).astype(jnp.float32),
        ((0, 0), (0, 0), (0, C_pad - num_classes)))
    return w_enc_p, b_enc_p, w_heads_p, b_heads_p


@functools.partial(jax.jit, static_argnames=("num_classes", "tk"))
def multi_head_image_classifier(inputs, head_idx, w_enc_p, b_enc_p, w_heads_p,
                                b_heads_p, num_classes, *, tk=2048):
    """Forward pass of the selected head.

    inputs:    [B, C, H, W] float32 (NCHW)
    head_idx:  int32 array of shape [1] -- selects the classification head
    *_p:       pre-padded / pre-cast params from `prepare_classifier_params`
    returns:   [B, num_classes] float32 logits
    """
    B, C, H, W = inputs.shape
    K = C * H * W
    K_pad, D_pad = w_enc_p.shape
    _, _, C_pad = w_heads_p.shape

    tk_eff = _tk_eff(tk, K)
    assert K_pad % tk_eff == 0, (K_pad, tk_eff)
    num_k_tiles = K_pad // tk_eff

    # Batch tiling: whole batch for tiny B; cap at the MXU row count so large
    # batches get a real "parallel" axis (shards across v7x's 2 TensorCores).
    B_pad = _round_up(max(B, _SUBLANE_BF16), _SUBLANE_BF16)
    tm = min(B_pad, _MAX_BATCH_TILE)
    B_pad = _round_up(B_pad, tm)
    num_b_tiles = B_pad // tm

    # Activation: one jnp.pad of the bf16 flatten (no zeros + .at[].set copy).
    x_p = jnp.pad(inputs.reshape(B, K).astype(jnp.bfloat16),
                  ((0, B_pad - B), (0, K_pad - K)))

    # Deepen the pipeline only when the K stream is long enough to benefit.
    multibuffer = num_k_tiles >= 3

    def _stream_spec(shape, index_map):
        if multibuffer:
            return pl.BlockSpec(shape, index_map,
                                pipeline_mode=pl.Buffered(3))
        return pl.BlockSpec(shape, index_map)

    buf = 3 if multibuffer else 2
    vmem_need = (buf * tm * tk_eff * 2          # x tiles (bf16)
                 + buf * tk_eff * D_pad * 2     # w_enc tiles (bf16)
                 + 2 * D_pad * 4                # b_enc (f32)
                 + 2 * D_pad * C_pad * 2        # selected head weight (bf16)
                 + 2 * C_pad * 4                # selected head bias (f32)
                 + 2 * tm * C_pad * 4           # logits tile (f32)
                 + tm * D_pad * 4)              # accumulator scratch (f32)
    vmem_limit = min(max(32 * 1024 * 1024, 2 * vmem_need), _VMEM_CAP_BYTES)
    vmem_limit = max(vmem_limit, vmem_need + (4 << 20))

    cost = pl.CostEstimate(
        flops=int(2 * B_pad * K_pad * D_pad + 2 * B_pad * D_pad * C_pad),
        transcendentals=int(B_pad * D_pad),
        bytes_accessed=int(B_pad * K_pad * 2                   # x (bf16)
                           + num_b_tiles * K_pad * D_pad * 2   # w_enc stream
                           + num_b_tiles * D_pad * 4           # b_enc
                           + num_b_tiles * D_pad * C_pad * 2   # head weight
                           + num_b_tiles * C_pad * 4           # head bias
                           + B_pad * C_pad * 4))               # logits out

    grid_spec = pltpu.PrefetchScalarGridSpec(
        num_scalar_prefetch=1,        # head_idx lands in SMEM, feeds index_maps
        grid=(num_b_tiles, num_k_tiles),   # (batch parallel, K reduction last)
        in_specs=[
            _stream_spec((tm, tk_eff), lambda i, k, hid: (i, k)),      # x
            _stream_spec((tk_eff, D_pad), lambda i, k, hid: (k, 0)),   # w_enc
            pl.BlockSpec((1, D_pad), lambda i, k, hid: (0, 0)),        # b_enc
            pl.BlockSpec((None, D_pad, C_pad),
                         lambda i, k, hid: (hid[0], 0, 0)),            # w_heads[hid]
            pl.BlockSpec((None, 1, C_pad),
                         lambda i, k, hid: (hid[0], 0, 0)),            # b_heads[hid]
        ],
        out_specs=pl.BlockSpec((tm, C_pad), lambda i, k, hid: (i, 0)),
        scratch_shapes=[pltpu.VMEM((tm, D_pad), jnp.float32)],
    )

    out_pad = pl.pallas_call(
        _classifier_kernel,
        out_shape=jax.ShapeDtypeStruct((B_pad, C_pad), jnp.float32),
        grid_spec=grid_spec,
        compiler_params=pltpu.CompilerParams(
            dimension_semantics=("parallel", "arbitrary"),
            vmem_limit_bytes=int(vmem_limit)),
        cost_estimate=cost,
    )(head_idx, x_p, w_enc_p, b_enc_p, w_heads_p, b_heads_p)

    # Padded batch rows hold gelu(b_enc)-driven garbage logits by design; only
    # the real rows / real classes are returned.
    return out_pad[:B, :num_classes]


def _init_params(key, in_dim, hidden_dim, num_heads, num_classes):
    k1, k2, k3, k4 = jax.random.split(key, 4)
    w_enc = jax.random.normal(k1, (in_dim, hidden_dim), jnp.float32) * 0.02
    b_enc = jax.random.normal(k2, (1, hidden_dim), jnp.float32) * 0.01
    w_heads = jax.random.normal(
        k3, (num_heads, hidden_dim, num_classes), jnp.float32) * 0.02
    b_heads = jax.random.normal(
        k4, (num_heads, num_classes), jnp.float32) * 0.01
    return w_enc, b_enc, w_heads, b_heads


if __name__ == "__main__":
    key = jax.random.PRNGKey(0)
    k_in, k_params = jax.random.split(key)

    # Small shapes: batch=2, channels=4, spatial=16x16, hidden=32,
    # 3 classification heads, 10 classes each.
    B, C, H, W = 2, 4, 16, 16
    hidden_dim, num_heads, num_classes = 32, 3, 10

    inputs = jax.random.normal(k_in, (B, C, H, W), jnp.float32)
    w_enc, b_enc, w_heads, b_heads = _init_params(
        k_params, C * H * W, hidden_dim, num_heads, num_classes)

    # One-time (module-init) weight prep: pad + cast, off the per-call path.
    w_enc_p, b_enc_p, w_heads_p, b_heads_p = jax.block_until_ready(
        prepare_classifier_params(w_enc, b_enc, w_heads, b_heads))

    head_idx = jnp.array([1], dtype=jnp.int32)   # select head 1

    logits = multi_head_image_classifier(inputs, head_idx, w_enc_p, b_enc_p,
                                         w_heads_p, b_heads_p, num_classes)
    jax.block_until_ready(logits)

    # Pure-JAX reference of the same synthetic forward pass (mirrors the
    # kernel's bf16-input / f32-accumulation math and tanh GELU).
    x_flat = inputs.reshape(B, -1)
    feat_ref = jax.nn.gelu(
        jnp.dot(x_flat.astype(jnp.bfloat16), w_enc.astype(jnp.bfloat16),
                preferred_element_type=jnp.float32) + b_enc,
        approximate=True)
    logits_ref = jnp.dot(feat_ref.astype(jnp.bfloat16),
                         w_heads[1].astype(jnp.bfloat16),
                         preferred_element_type=jnp.float32) + b_heads[1]

    assert logits.shape == (B, num_classes)
    assert jnp.allclose(logits, logits_ref, atol=2e-2, rtol=2e-2), (
        jnp.max(jnp.abs(logits - logits_ref)))

    print("KERNEL_OK")
</pallas_src>

<mosaic_0001>
module attributes {stable_mosaic.version = 11 : i64} {
  func.func @_classifier_kernel(%arg0: i32, %arg1: i32, %arg2: memref<1xi32, #tpu.memory_space<smem>>, %arg3: memref<16x1024xbf16, #tpu.memory_space<vmem>>, %arg4: memref<1024x128xbf16, #tpu.memory_space<vmem>>, %arg5: memref<1x128xf32, #tpu.memory_space<vmem>>, %arg6: memref<1x128x128xbf16, #tpu.memory_space<vmem>>, %arg7: memref<1x1x128xf32, #tpu.memory_space<vmem>>, %arg8: memref<16x128xf32, #tpu.memory_space<vmem>>, %arg9: memref<16x128xf32, #tpu.memory_space<vmem>>) attributes {dimension_semantics = [#tpu.dimension_semantics<parallel>, #tpu.dimension_semantics<arbitrary>], iteration_bounds = array<i64: 1, 1>, scalar_prefetch = 1 : i64, scratch_operands = 1 : i64, tpu.core_type = #tpu.core_type<tc>, window_params = [{transform_indices = @transform_0, window_bounds = array<i64: 16, 1024>}, {transform_indices = @transform_1, window_bounds = array<i64: 1024, 128>}, {pipeline_mode = #tpu.pipeline_mode<synchronous>, transform_indices = @transform_2, window_bounds = array<i64: 1, 128>}, {transform_indices = @transform_3, window_bounds = array<i64: 1, 128, 128>}, {transform_indices = @transform_4, window_bounds = array<i64: 1, 1, 128>}, {transform_indices = @transform_5, window_bounds = array<i64: 16, 128>}]} {
    %c0_i32 = arith.constant 0 : i32
    %0 = arith.cmpi eq, %arg1, %c0_i32 : i32
    %1 = arith.extui %0 : i1 to i32
    %c0_i32_0 = arith.constant 0 : i32
    %2 = arith.cmpi ne, %1, %c0_i32_0 : i32
    scf.if %2 {
      %cst_10 = arith.constant 0.000000e+00 : f32
      %12 = vector.broadcast %cst_10 : f32 to vector<16x128xf32>
      %c0_11 = arith.constant 0 : index
      %c0_12 = arith.constant 0 : index
      %13 = vector.load %arg9[%c0_11, %c0_12] : memref<16x128xf32, #tpu.memory_space<vmem>>, vector<16x128xf32>
      tpu.vector_store %arg9[%c0_11, %c0_12], %12 {strides = array<i32>} : memref<16x128xf32, #tpu.memory_space<vmem>>, vector<16x128xf32>,
    } else {
    }
    %c0 = arith.constant 0 : index
    %c0_1 = arith.constant 0 : index
    %3 = vector.load %arg9[%c0, %c0_1] : memref<16x128xf32, #tpu.memory_space<vmem>>, vector<16x128xf32>
    %c0_2 = arith.constant 0 : index
    %c0_3 = arith.constant 0 : index
    %4 = vector.load %arg3[%c0_2, %c0_3] : memref<16x1024xbf16, #tpu.memory_space<vmem>>, vector<16x1024xbf16>
    %c0_4 = arith.constant 0 : index
    %c0_5 = arith.constant 0 : index
    %5 = vector.load %arg4[%c0_4, %c0_5] : memref<1024x128xbf16, #tpu.memory_space<vmem>>, vector<1024x128xbf16>
    %cst = arith.constant dense<0.000000e+00> : vector<16x128xf32>
    %6 = tpu.matmul %4, %5, %cst {dimension_numbers = #tpu.dot_dimension_numbers<[1], [0], [0], [1], [0, 0, 1, 1], [], []>} : vector<16x1024xbf16>, vector<1024x128xbf16>, vector<16x128xf32> -> vector<16x128xf32>
    %7 = arith.addf %3, %6 : vector<16x128xf32>
    %c0_6 = arith.constant 0 : index
    %c0_7 = arith.constant 0 : index
    %8 = vector.load %arg9[%c0_6, %c0_7] : memref<16x128xf32, #tpu.memory_space<vmem>>, vector<16x128xf32>
    tpu.vector_store %arg9[%c0_6, %c0_7], %7 {strides = array<i32>} : memref<16x128xf32, #tpu.memory_space<vmem>>, vector<16x128xf32>,
    %c0_i32_8 = arith.constant 0 : i32
    %9 = arith.cmpi eq, %arg1, %c0_i32_8 : i32
    %10 = arith.extui %9 : i1 to i32
    %c0_i32_9 = arith.constant 0 : i32
    %11 = arith.cmpi ne, %10, %c0_i32_9 : i32
    scf.if %11 {
      %c0_10 = arith.constant 0 : index
      %c0_11 = arith.constant 0 : index
      %12 = vector.load %arg9[%c0_10, %c0_11] : memref<16x128xf32, #tpu.memory_space<vmem>>, vector<16x128xf32>
      %c0_12 = arith.constant 0 : index
      %c0_13 = arith.constant 0 : index
      %13 = vector.load %arg5[%c0_12, %c0_13] : memref<1x128xf32, #tpu.memory_space<vmem>>, vector<1x128xf32>
      %14 = vector.broadcast %13 : vector<1x128xf32> to vector<16x128xf32>
      %15 = arith.addf %12, %14 : vector<16x128xf32>
      %16 = arith.mulf %15, %15 : vector<16x128xf32>
      %17 = arith.mulf %15, %16 : vector<16x128xf32>
      %cst_14 = arith.constant 4.471500e-02 : f32
      %18 = vector.broadcast %cst_14 : f32 to vector<16x128xf32>
      %19 = arith.mulf %18, %17 : vector<16x128xf32>
      %20 = arith.addf %15, %19 : vector<16x128xf32>
      %cst_15 = arith.constant 0.797884583 : f32
      %21 = vector.broadcast %cst_15 : f32 to vector<16x128xf32>
      %22 = arith.mulf %21, %20 : vector<16x128xf32>
      %23 = math.tanh %22 : vector<16x128xf32>
      %cst_16 = arith.constant 1.000000e+00 : f32
      %24 = vector.broadcast %cst_16 : f32 to vector<16x128xf32>
      %25 = arith.addf %24, %23 : vector<16x128xf32>
      %cst_17 = arith.constant 5.000000e-01 : f32
      %26 = vector.broadcast %cst_17 : f32 to vector<16x128xf32>
      %27 = arith.mulf %26, %25 : vector<16x128xf32>
      %28 = arith.mulf %15, %27 : vector<16x128xf32>
      %29 = arith.truncf %28 : vector<16x128xf32> to vector<16x128xbf16>
      %c0_18 = arith.constant 0 : index
      %c0_19 = arith.constant 0 : index
      %c0_20 = arith.constant 0 : index
      %30 = vector.load %arg6[%c0_18, %c0_19, %c0_20] : memref<1x128x128xbf16, #tpu.memory_space<vmem>>, vector<1x128x128xbf16>
      %31 = vector.shape_cast %30 : vector<1x128x128xbf16> to vector<128x128xbf16>
      %cst_21 = arith.constant dense<0.000000e+00> : vector<16x128xf32>
      %32 = tpu.matmul %29, %31, %cst_21 {dimension_numbers = #tpu.dot_dimension_numbers<[1], [0], [0], [1], [0, 0, 1, 1], [], []>} : vector<16x128xbf16>, vector<128x128xbf16>, vector<16x128xf32> -> vector<16x128xf32>
      %c0_22 = arith.constant 0 : index
      %c0_23 = arith.constant 0 : index
      %c0_24 = arith.constant 0 : index
      %33 = vector.load %arg7[%c0_22, %c0_23, %c0_24] : memref<1x1x128xf32, #tpu.memory_space<vmem>>, vector<1x1x128xf32>
      %34 = vector.shape_cast %33 : vector<1x1x128xf32> to vector<1x128xf32>
      %35 = vector.broadcast %34 : vector<1x128xf32> to vector<16x128xf32>
      %36 = arith.addf %32, %35 : vector<16x128xf32>
      %c0_25 = arith.constant 0 : index
      %c0_26 = arith.constant 0 : index
      %37 = vector.load %arg8[%c0_25, %c0_26] : memref<16x128xf32, #tpu.memory_space<vmem>>, vector<16x128xf32>
      tpu.vector_store %arg8[%c0_25, %c0_26], %36 {strides = array<i32>} : memref<16x128xf32, #tpu.memory_space<vmem>>, vector<16x128xf32>,
    } else {
    }
    return
  }
  func.func @transform_0(%arg0: i32, %arg1: i32, %arg2: memref<1xi32, #tpu.memory_space<smem>>) -> (i32, i32) {
    %c0_i32 = arith.constant 0 : i32
    return %arg0, %arg1 : i32, i32
  }
  func.func @transform_1(%arg0: i32, %arg1: i32, %arg2: memref<1xi32, #tpu.memory_space<smem>>) -> (i32, i32) {
    %c0_i32 = arith.constant 0 : i32
    %c0_i32_0 = arith.constant 0 : i32
    return %arg1, %c0_i32 : i32, i32
  }
  func.func @transform_2(%arg0: i32, %arg1: i32, %arg2: memref<1xi32, #tpu.memory_space<smem>>) -> (i32, i32) {
    %c0_i32 = arith.constant 0 : i32
    %c0_i32_0 = arith.constant 0 : i32
    %c0_i32_1 = arith.constant 0 : i32
    return %c0_i32, %c0_i32_0 : i32, i32
  }
  func.func @transform_3(%arg0: i32, %arg1: i32, %arg2: memref<1xi32, #tpu.memory_space<smem>>) -> (i32, i32, i32) {
    %c0 = arith.constant 0 : index
    %0 = memref.load %arg2[%c0] : memref<1xi32, #tpu.memory_space<smem>>
    %c0_i32 = arith.constant 0 : i32
    %c0_i32_0 = arith.constant 0 : i32
    %c0_i32_1 = arith.constant 0 : i32
    return %0, %c0_i32, %c0_i32_0 : i32, i32, i32
  }
  func.func @transform_4(%arg0: i32, %arg1: i32, %arg2: memref<1xi32, #tpu.memory_space<smem>>) -> (i32, i32, i32) {
    %c0 = arith.constant 0 : index
    %0 = memref.load %arg2[%c0] : memref<1xi32, #tpu.memory_space<smem>>
    %c0_i32 = arith.constant 0 : i32
    %c0_i32_0 = arith.constant 0 : i32
    %c0_i32_1 = arith.constant 0 : i32
    return %0, %c0_i32, %c0_i32_0 : i32, i32, i32
  }
  func.func @transform_5(%arg0: i32, %arg1: i32, %arg2: memref<1xi32, #tpu.memory_space<smem>>) -> (i32, i32) {
    %c0_i32 = arith.constant 0 : i32
    %c0_i32_0 = arith.constant 0 : i32
    return %arg0, %c0_i32 : i32, i32
  }
}

</mosaic_0001>

<llo_original>
// kernel: multi_head_image_classifier.1
$region0: #{multi_head_image_classifier.1}
  #allocation0 [shape = 'u32[]', space=smem, size = 0x4, offset = 0x4, fixed_abs, tag = 'smem constant byte address 0x4 - core index']
  #allocation1 [shape = 'u32[144,128]{1,0:T(1,128)}', space=vmem, size = 0x12000, scoped, tag = 'internal scratch']
  #allocation2 [shape = 'f32[16,128]{1,0:T(8,128)}', space=vmem, size = 0x2000, scoped, tag = 'scratch operand']
  #allocation3 [shape = 's32[1]{0}', space=sflag, size = 0x4, scoped, tag = 'scoped memory for multi_head_image_classifier.1']
  #allocation4 [shape = 's32[1]{0:T(128)S(6)}', space=smem, size = 0x200, scoped, tag = 'prefetched SMEM operand 0']
  %s0 = inlined_call_operand.<no memory space> [shape: s32[1], index: 0, kind: input, shape index: {}]
  %s1 = inlined_call_operand.vmem [shape: bf16[16,1024], index: 1, kind: input, shape index: {}]
  %s2 = inlined_call_operand.hbm [shape: bf16[1024,128], index: 2, kind: input, shape index: {}]
  %s3 = inlined_call_operand.vmem [shape: f32[1,128], index: 3, kind: input, shape index: {}]
  %s4 = inlined_call_operand.vmem [shape: bf16[3,128,128], index: 4, kind: input, shape index: {}]
  %s5 = inlined_call_operand.vmem [shape: f32[3,1,128], index: 5, kind: input, shape index: {}]
  %s6 = inlined_call_operand.vmem [shape: f32[16,128], index: 6, kind: output, shape index: {}]
  %s7 = sld [smem:[#allocation0]]
  $region42: #{multi_head_image_classifier.1} parent=0
    _
  %s9 = ssub.s32 1, %s7
  %s10 = scalar_select 0, %s9, %s7
  %11 = sst [smem:[#allocation4]] %s0
  $region1: #{multi_head_image_classifier.1} parent=0
    #allocation5 [shape = 'u8[262144]{0}', space=vmem, size = 0x40000, scoped, tag = 'input window, operand 2, single buffered']
    #allocation6 [shape = 's32[1]{0}', space=sflag, size = 0x4, scoped, tag = 'scoped memory for multi_head_image_classifier.1']
    %12 = vsyncpa [#allocation6], 0
    // Predicated region
    $region2: #{multi_head_image_classifier.1} parent=1 // pred_check
      _
    $region3: #{multi_head_image_classifier.1} parent=1 // pred_check_branch
      %14 = sbr.rel (0) target = $region5
    $region4: #{multi_head_image_classifier.1} parent=1 // pred_region
      _
    $region5: #{multi_head_image_classifier.1} parent=1 // pred_fallthru
      _
    // Predicated region
    $region6: #{multi_head_image_classifier.1} parent=1 // pred_check
      _
    $region7: #{multi_head_image_classifier.1} parent=1 // pred_check_branch
      %16 = sbr.rel (0) target = $region9
    $region8: #{multi_head_image_classifier.1} parent=1 // pred_region
      %s18 = ssub.s32 8192, 8192
      %19 = vsyncadd [#allocation6], %s18
      %s20 = sshll.u32 [#allocation5], 4
      %s21 = int_to_ptr.vmem [resolvable:$true] %s20
      %26 = dma.hbm_to_vmem [thread:$0]  %s2, 8192, %s21, [#allocation6], 64, 64, 4
    $region9: #{multi_head_image_classifier.1} parent=1 // pred_fallthru
      _
    // Predicated region
    $region10: #{multi_head_image_classifier.1} parent=1 // pred_check
      _
    $region11: #{multi_head_image_classifier.1} parent=1 // pred_check_branch
      %28 = sbr.rel (0) target = $region13
    $region12: #{multi_head_image_classifier.1} parent=1 // pred_region
      _
    $region13: #{multi_head_image_classifier.1} parent=1 // pred_fallthru
      _
    // Predicated region
    $region14: #{multi_head_image_classifier.1} parent=1 // pred_check
      _
    $region15: #{multi_head_image_classifier.1} parent=1 // pred_check_branch
      %30 = sbr.rel (0) target = $region17
    $region16: #{multi_head_image_classifier.1} parent=1 // pred_region
      %s31 = sld [smem:[#allocation4]]
      %p32 = scmp.lt.s32.totalorder %s31, 2
      %s33 = scalar_select %p32, %s31, 2
      %s34 = smul.addr %s33, 16
      %s35 = smul.addr %s34, 4
      %s36 = scalar_lea.vmem %s4, %s35
      %s37 = sld [smem:[#allocation4]]
    $region17: #{multi_head_image_classifier.1} parent=1 // pred_fallthru
      _
    // Predicated region
    $region18: #{multi_head_image_classifier.1} parent=1 // pred_check
      _
    $region19: #{multi_head_image_classifier.1} parent=1 // pred_check_branch
      %39 = sbr.rel (0) target = $region21
    $region20: #{multi_head_image_classifier.1} parent=1 // pred_region
      %s40 = sld [smem:[#allocation4]]
      %p41 = scmp.lt.s32.totalorder %s40, 2
      %s42 = scalar_select %p41, %s40, 2
      %s43 = scalar_lea.vmem %s5, %s42
      %s44 = sld [smem:[#allocation4]]
    $region21: #{multi_head_image_classifier.1} parent=1 // pred_fallthru
      _
    // Predicated region
    $region22: #{multi_head_image_classifier.1} parent=1 // pred_check
      _
    $region23: #{multi_head_image_classifier.1} parent=1 // pred_check_branch
      %46 = sbr.rel (0) target = $region25
    $region24: #{multi_head_image_classifier.1} parent=1 // pred_region
      %47 = dma.done [#allocation6], 8192
    $region25: #{multi_head_image_classifier.1} parent=1 // pred_fallthru
      _
    %s48 = sld [smem:[#allocation4]]
    %p49 = scmp.lt.s32.totalorder %s48, 2
    %s50 = scalar_select %p49, %s48, 2
    %s51 = smul.addr %s50, 16
    %s52 = smul.addr %s51, 4
    %s53 = scalar_lea.vmem %s4, %s52
    %s54 = sld [smem:[#allocation4]]
    %p55 = scmp.lt.s32.totalorder %s54, 2
    %s56 = scalar_select %p55, %s54, 2
    %s57 = scalar_lea.vmem %s5, %s56
    %s58 = sld [smem:[#allocation4]]
    %p59 = scmp.lt.s32.totalorder %s58, 2
    %s60 = scalar_select %p59, %s58, 2
    %s61 = smul.addr %s60, 16
    %s62 = smul.addr %s61, 4
    %s63 = scalar_lea.vmem %s4, %s62
    %s64 = sld [smem:[#allocation4]]
    %s65 = sld [smem:[#allocation4]]
    %p66 = scmp.lt.s32.totalorder %s65, 2
    %s67 = scalar_select %p66, %s65, 2
    %s68 = scalar_lea.vmem %s5, %s67
    %s69 = sld [smem:[#allocation4]]
    %p71 = scmp.eq.s32.totalorder 0, 0
    // Predicated region
    $region26: #{multi_head_image_classifier.1} parent=1 // pred_check
      %p72 = pneg %p71
    $region27: #{multi_head_image_classifier.1} parent=1 // pred_check_branch
      %74 = sbr.rel (%p72) target = $region29
    $region28: #{multi_head_image_classifier.1} parent=1 // pred_region
      %75 = vst [vmem:[#allocation2] sm:$0xff] 0.0
      %76 = vst [vmem:[#allocation2 + $0x8] sm:$0xff] 0.0
    $region29: #{multi_head_image_classifier.1} parent=1 // pred_fallthru
      _
    %v77 = vld [vmem:[#allocation2] sm:$0xff]
    %v78 = vld [vmem:[#allocation2 + $0x8] sm:$0xff]
    %v79 = vld [vmem:[%s1] sm:$0xff]
    %v80 = vld [vmem:[%s1 + $0x8] sm:$0xff]
    %v81 = vld [vmem:[%s1 + $0x10] sm:$0xff]
    %v82 = vld [vmem:[%s1 + $0x18] sm:$0xff]
    %v83 = vld [vmem:[%s1 + $0x20] sm:$0xff]
    %v84 = vld [vmem:[%s1 + $0x28] sm:$0xff]
    %v85 = vld [vmem:[%s1 + $0x30] sm:$0xff]
    %v86 = vld [vmem:[%s1 + $0x38] sm:$0xff]
    %v87 = vld [vmem:[#allocation5] sm:$0xf]
    %v88 = vld [vmem:[#allocation5 + $0x4] sm:$0xf]
    %v89 = vld [vmem:[#allocation5 + $0x8] sm:$0xf]
    %v90 = vld [vmem:[#allocation5 + $0xc] sm:$0xf]
    %v91 = vld [vmem:[#allocation5 + $0x10] sm:$0xf]
    %v92 = vld [vmem:[#allocation5 + $0x14] sm:$0xf]
    %v93 = vld [vmem:[#allocation5 + $0x18] sm:$0xf]
    %v94 = vld [vmem:[#allocation5 + $0x1c] sm:$0xf]
    %v95 = vld [vmem:[#allocation5 + $0x20] sm:$0xf]
    %v96 = vld [vmem:[#allocation5 + $0x24] sm:$0xf]
    %v97 = vld [vmem:[#allocation5 + $0x28] sm:$0xf]
    %v98 = vld [vmem:[#allocation5 + $0x2c] sm:$0xf]
    %v99 = vld [vmem:[#allocation5 + $0x30] sm:$0xf]
    %v100 = vld [vmem:[#allocation5 + $0x34] sm:$0xf]
    %v101 = vld [vmem:[#allocation5 + $0x38] sm:$0xf]
    %v102 = vld [vmem:[#allocation5 + $0x3c] sm:$0xf]
    %v103 = vld [vmem:[#allocation5 + $0x40] sm:$0xf]
    %v104 = vld [vmem:[#allocation5 + $0x44] sm:$0xf]
    %v105 = vld [vmem:[#allocation5 + $0x48] sm:$0xf]
    %v106 = vld [vmem:[#allocation5 + $0x4c] sm:$0xf]
    %v107 = vld [vmem:[#allocation5 + $0x50] sm:$0xf]
    %v108 = vld [vmem:[#allocation5 + $0x54] sm:$0xf]
    %v109 = vld [vmem:[#allocation5 + $0x58] sm:$0xf]
    %v110 = vld [vmem:[#allocation5 + $0x5c] sm:$0xf]
    %v111 = vld [vmem:[#allocation5 + $0x60] sm:$0xf]
    %v112 = vld [vmem:[#allocation5 + $0x64] sm:$0xf]
    %v113 = vld [vmem:[#allocation5 + $0x68] sm:$0xf]
    %v114 = vld [vmem:[#allocation5 + $0x6c] sm:$0xf]
    %v115 = vld [vmem:[#allocation5 + $0x70] sm:$0xf]
    %v116 = vld [vmem:[#allocation5 + $0x74] sm:$0xf]
    %v117 = vld [vmem:[#allocation5 + $0x78] sm:$0xf]
    %v118 = vld [vmem:[#allocation5 + $0x7c] sm:$0xf]
    %v119 = vld [vmem:[#allocation5 + $0x80] sm:$0xf]
    %v120 = vld [vmem:[#allocation5 + $0x84] sm:$0xf]
    %v121 = vld [vmem:[#allocation5 + $0x88] sm:$0xf]
    %v122 = vld [vmem:[#allocation5 + $0x8c] sm:$0xf]
    %v123 = vld [vmem:[#allocation5 + $0x90] sm:$0xf]
    %v124 = vld [vmem:[#allocation5 + $0x94] sm:$0xf]
    %v125 = vld [vmem:[#allocation5 + $0x98] sm:$0xf]
    %v126 = vld [vmem:[#allocation5 + $0x9c] sm:$0xf]
    %v127 = vld [vmem:[#allocation5 + $0xa0] sm:$0xf]
    %v128 = vld [vmem:[#allocation5 + $0xa4] sm:$0xf]
    %v129 = vld [vmem:[#allocation5 + $0xa8] sm:$0xf]
    %v130 = vld [vmem:[#allocation5 + $0xac] sm:$0xf]
    %v131 = vld [vmem:[#allocation5 + $0xb0] sm:$0xf]
    %v132 = vld [vmem:[#allocation5 + $0xb4] sm:$0xf]
    %v133 = vld [vmem:[#allocation5 + $0xb8] sm:$0xf]
    %v134 = vld [vmem:[#allocation5 + $0xbc] sm:$0xf]
    %v135 = vld [vmem:[#allocation5 + $0xc0] sm:$0xf]
    %v136 = vld [vmem:[#allocation5 + $0xc4] sm:$0xf]
    %v137 = vld [vmem:[#allocation5 + $0xc8] sm:$0xf]
    %v138 = vld [vmem:[#allocation5 + $0xcc] sm:$0xf]
    %v139 = vld [vmem:[#allocation5 + $0xd0] sm:$0xf]
    %v140 = vld [vmem:[#allocation5 + $0xd4] sm:$0xf]
    %v141 = vld [vmem:[#allocation5 + $0xd8] sm:$0xf]
    %v142 = vld [vmem:[#allocation5 + $0xdc] sm:$0xf]
    %v143 = vld [vmem:[#allocation5 + $0xe0] sm:$0xf]
    %v144 = vld [vmem:[#allocation5 + $0xe4] sm:$0xf]
    %v145 = vld [vmem:[#allocation5 + $0xe8] sm:$0xf]
    %v146 = vld [vmem:[#allocation5 + $0xec] sm:$0xf]
    %v147 = vld [vmem:[#allocation5 + $0xf0] sm:$0xf]
    %v148 = vld [vmem:[#allocation5 + $0xf4] sm:$0xf]
    %v149 = vld [vmem:[#allocation5 + $0xf8] sm:$0xf]
    %v150 = vld [vmem:[#allocation5 + $0xfc] sm:$0xf]
    %v151 = vld [vmem:[#allocation5 + $0x100] sm:$0xf]
    %v152 = vld [vmem:[#allocation5 + $0x104] sm:$0xf]
    %v153 = vld [vmem:[#allocation5 + $0x108] sm:$0xf]
    %v154 = vld [vmem:[#allocation5 + $0x10c] sm:$0xf]
    %v155 = vld [vmem:[#allocation5 + $0x110] sm:$0xf]
    %v156 = vld [vmem:[#allocation5 + $0x114] sm:$0xf]
    %v157 = vld [vmem:[#allocation5 + $0x118] sm:$0xf]
    %v158 = vld [vmem:[#allocation5 + $0x11c] sm:$0xf]
    %v159 = vld [vmem:[#allocation5 + $0x120] sm:$0xf]
    %v160 = vld [vmem:[#allocation5 + $0x124] sm:$0xf]
    %v161 = vld [vmem:[#allocation5 + $0x128] sm:$0xf]
    %v162 = vld [vmem:[#allocation5 + $0x12c] sm:$0xf]
    %v163 = vld [vmem:[#allocation5 + $0x130] sm:$0xf]
    %v164 = vld [vmem:[#allocation5 + $0x134] sm:$0xf]
    %v165 = vld [vmem:[#allocation5 + $0x138] sm:$0xf]
    %v166 = vld [vmem:[#allocation5 + $0x13c] sm:$0xf]
    %v167 = vld [vmem:[#allocation5 + $0x140] sm:$0xf]
    %v168 = vld [vmem:[#allocation5 + $0x144] sm:$0xf]
    %v169 = vld [vmem:[#allocation5 + $0x148] sm:$0xf]
    %v170 = vld [vmem:[#allocation5 + $0x14c] sm:$0xf]
    %v171 = vld [vmem:[#allocation5 + $0x150] sm:$0xf]
    %v172 = vld [vmem:[#allocation5 + $0x154] sm:$0xf]
    %v173 = vld [vmem:[#allocation5 + $0x158] sm:$0xf]
    %v174 = vld [vmem:[#allocation5 + $0x15c] sm:$0xf]
    %v175 = vld [vmem:[#allocation5 + $0x160] sm:$0xf]
    %v176 = vld [vmem:[#allocation5 + $0x164] sm:$0xf]
    %v177 = vld [vmem:[#allocation5 + $0x168] sm:$0xf]
    %v178 = vld [vmem:[#allocation5 + $0x16c] sm:$0xf]
    %v179 = vld [vmem:[#allocation5 + $0x170] sm:$0xf]
    %v180 = vld [vmem:[#allocation5 + $0x174] sm:$0xf]
    %v181 = vld [vmem:[#allocation5 + $0x178] sm:$0xf]
    %v182 = vld [vmem:[#allocation5 + $0x17c] sm:$0xf]
    %v183 = vld [vmem:[#allocation5 + $0x180] sm:$0xf]
    %v184 = vld [vmem:[#allocation5 + $0x184] sm:$0xf]
    %v185 = vld [vmem:[#allocation5 + $0x188] sm:$0xf]
    %v186 = vld [vmem:[#allocation5 + $0x18c] sm:$0xf]
    %v187 = vld [vmem:[#allocation5 + $0x190] sm:$0xf]
    %v188 = vld [vmem:[#allocation5 + $0x194] sm:$0xf]
    %v189 = vld [vmem:[#allocation5 + $0x198] sm:$0xf]
    %v190 = vld [vmem:[#allocation5 + $0x19c] sm:$0xf]
    %v191 = vld [vmem:[#allocation5 + $0x1a0] sm:$0xf]
    %v192 = vld [vmem:[#allocation5 + $0x1a4] sm:$0xf]
    %v193 = vld [vmem:[#allocation5 + $0x1a8] sm:$0xf]
    %v194 = vld [vmem:[#allocation5 + $0x1ac] sm:$0xf]
    %v195 = vld [vmem:[#allocation5 + $0x1b0] sm:$0xf]
    %v196 = vld [vmem:[#allocation5 + $0x1b4] sm:$0xf]
    %v197 = vld [vmem:[#allocation5 + $0x1b8] sm:$0xf]
    %v198 = vld [vmem:[#allocation5 + $0x1bc] sm:$0xf]
    %v199 = vld [vmem:[#allocation5 + $0x1c0] sm:$0xf]
    %v200 = vld [vmem:[#allocation5 + $0x1c4] sm:$0xf]
    %v201 = vld [vmem:[#allocation5 + $0x1c8] sm:$0xf]
    %v202 = vld [vmem:[#allocation5 + $0x1cc] sm:$0xf]
    %v203 = vld [vmem:[#allocation5 + $0x1d0] sm:$0xf]
    %v204 = vld [vmem:[#allocation5 + $0x1d4] sm:$0xf]
    %v205 = vld [vmem:[#allocation5 + $0x1d8] sm:$0xf]
    %v206 = vld [vmem:[#allocation5 + $0x1dc] sm:$0xf]
    %v207 = vld [vmem:[#allocation5 + $0x1e0] sm:$0xf]
    %v208 = vld [vmem:[#allocation5 + $0x1e4] sm:$0xf]
    %v209 = vld [vmem:[#allocation5 + $0x1e8] sm:$0xf]
    %v210 = vld [vmem:[#allocation5 + $0x1ec] sm:$0xf]
    %v211 = vld [vmem:[#allocation5 + $0x1f0] sm:$0xf]
    %v212 = vld [vmem:[#allocation5 + $0x1f4] sm:$0xf]
    %v213 = vld [vmem:[#allocation5 + $0x1f8] sm:$0xf]
    %v214 = vld [vmem:[#allocation5 + $0x1fc] sm:$0xf]
    %v223 = vunpack.c.l.b16 %v79
    %v224 = vunpack.c.h.b16 %v79
    %v225 = vunpack.c.l.b16 %v80
    %v226 = vunpack.c.h.b16 %v80
    %v227 = vunpack.c.l.b16 %v81
    %v228 = vunpack.c.h.b16 %v81
    %v229 = vunpack.c.l.b16 %v82
    %v230 = vunpack.c.h.b16 %v82
    %v231 = vunpack.c.l.b16 %v83
    %v232 = vunpack.c.h.b16 %v83
    %v233 = vunpack.c.l.b16 %v84
    %v234 = vunpack.c.h.b16 %v84
    %v235 = vunpack.c.l.b16 %v85
    %v236 = vunpack.c.h.b16 %v85
    %v237 = vunpack.c.l.b16 %v86
    %v238 = vunpack.c.h.b16 %v86
    %v239 = vpack.c.b16 %v231, %v223
    %v240 = vpack.c.b16 %v232, %v224
    %v241 = vpack.c.b16 %v233, %v225
    %v242 = vpack.c.b16 %v234, %v226
    %v243 = vpack.c.b16 %v235, %v227
    %v244 = vpack.c.b16 %v236, %v228
    %v245 = vpack.c.b16 %v237, %v229
    %v246 = vpack.c.b16 %v238, %v230
    %v383 = vunpack.c.l.b16 %v87
    %v384 = vunpack.c.l.b16 %v88
    %v385 = vunpack.c.l.b16 %v89
    %v386 = vunpack.c.l.b16 %v90
    %v387 = vunpack.c.l.b16 %v91
    %v388 = vunpack.c.l.b16 %v92
    %v389 = vunpack.c.l.b16 %v93
    %v390 = vunpack.c.l.b16 %v94
    %v391 = vunpack.c.l.b16 %v95
    %v392 = vunpack.c.l.b16 %v96
    %v393 = vunpack.c.l.b16 %v97
    %v394 = vunpack.c.l.b16 %v98
    %v395 = vunpack.c.l.b16 %v99
    %v396 = vunpack.c.l.b16 %v100
    %v397 = vunpack.c.l.b16 %v101
    %v398 = vunpack.c.l.b16 %v102
    %v399 = vunpack.c.l.b16 %v103
    %v400 = vunpack.c.l.b16 %v104
    %v401 = vunpack.c.l.b16 %v105
    %v402 = vunpack.c.l.b16 %v106
    %v403 = vunpack.c.l.b16 %v107
    %v404 = vunpack.c.l.b16 %v108
    %v405 = vunpack.c.l.b16 %v109
    %v406 = vunpack.c.l.b16 %v110
    %v407 = vunpack.c.l.b16 %v111
    %v408 = vunpack.c.l.b16 %v112
    %v409 = vunpack.c.l.b16 %v113
    %v410 = vunpack.c.l.b16 %v114
    %v411 = vunpack.c.l.b16 %v115
    %v412 = vunpack.c.l.b16 %v116
    %v413 = vunpack.c.l.b16 %v117
    %v414 = vunpack.c.l.b16 %v118
    %v415 = vunpack.c.l.b16 %v119
    %v416 = vunpack.c.l.b16 %v120
    %v417 = vunpack.c.l.b16 %v121
    %v418 = vunpack.c.l.b16 %v122
    %v419 = vunpack.c.l.b16 %v123
    %v420 = vunpack.c.l.b16 %v124
    %v421 = vunpack.c.l.b16 %v125
    %v422 = vunpack.c.l.b16 %v126
    %v423 = vunpack.c.l.b16 %v127
    %v424 = vunpack.c.l.b16 %v128
    %v425 = vunpack.c.l.b16 %v129
    %v426 = vunpack.c.l.b16 %v130
    %v427 = vunpack.c.l.b16 %v131
    %v428 = vunpack.c.l.b16 %v132
    %v429 = vunpack.c.l.b16 %v133
    %v430 = vunpack.c.l.b16 %v134
    %v431 = vunpack.c.l.b16 %v135
    %v432 = vunpack.c.l.b16 %v136
    %v433 = vunpack.c.l.b16 %v137
    %v434 = vunpack.c.l.b16 %v138
    %v435 = vunpack.c.l.b16 %v139
    %v436 = vunpack.c.l.b16 %v140
    %v437 = vunpack.c.l.b16 %v141
    %v438 = vunpack.c.l.b16 %v142
    %v439 = vunpack.c.l.b16 %v143
    %v440 = vunpack.c.l.b16 %v144
    %v441 = vunpack.c.l.b16 %v145
    %v442 = vunpack.c.l.b16 %v146
    %v443 = vunpack.c.l.b16 %v147
    %v444 = vunpack.c.l.b16 %v148
    %v445 = vunpack.c.l.b16 %v149
    %v446 = vunpack.c.l.b16 %v150
    %v447 = vunpack.c.l.b16 %v151
    %v448 = vunpack.c.l.b16 %v152
    %v449 = vunpack.c.l.b16 %v153
    %v450 = vunpack.c.l.b16 %v154
    %v451 = vunpack.c.l.b16 %v155
    %v452 = vunpack.c.l.b16 %v156
    %v453 = vunpack.c.l.b16 %v157
    %v454 = vunpack.c.l.b16 %v158
    %v455 = vunpack.c.l.b16 %v159
    %v456 = vunpack.c.l.b16 %v160
    %v457 = vunpack.c.l.b16 %v161
    %v458 = vunpack.c.l.b16 %v162
    %v459 = vunpack.c.l.b16 %v163
    %v460 = vunpack.c.l.b16 %v164
    %v461 = vunpack.c.l.b16 %v165
    %v462 = vunpack.c.l.b16 %v166
    %v463 = vunpack.c.l.b16 %v167
    %v464 = vunpack.c.l.b16 %v168
    %v465 = vunpack.c.l.b16 %v169
    %v466 = vunpack.c.l.b16 %v170
    %v467 = vunpack.c.l.b16 %v171
    %v468 = vunpack.c.l.b16 %v172
    %v469 = vunpack.c.l.b16 %v173
    %v470 = vunpack.c.l.b16 %v174
    %v471 = vunpack.c.l.b16 %v175
    %v472 = vunpack.c.l.b16 %v176
    %v473 = vunpack.c.l.b16 %v177
    %v474 = vunpack.c.l.b16 %v178
    %v475 = vunpack.c.l.b16 %v179
    %v476 = vunpack.c.l.b16 %v180
    %v477 = vunpack.c.l.b16 %v181
    %v478 = vunpack.c.l.b16 %v182
    %v479 = vunpack.c.l.b16 %v183
    %v480 = vunpack.c.l.b16 %v184
    %v481 = vunpack.c.l.b16 %v185
    %v482 = vunpack.c.l.b16 %v186
    %v483 = vunpack.c.l.b16 %v187
    %v484 = vunpack.c.l.b16 %v188
    %v485 = vunpack.c.l.b16 %v189
    %v486 = vunpack.c.l.b16 %v190
    %v487 = vunpack.c.l.b16 %v191
    %v488 = vunpack.c.l.b16 %v192
    %v489 = vunpack.c.l.b16 %v193
    %v490 = vunpack.c.l.b16 %v194
    %v491 = vunpack.c.l.b16 %v195
    %v492 = vunpack.c.l.b16 %v196
    %v493 = vunpack.c.l.b16 %v197
    %v494 = vunpack.c.l.b16 %v198
    %v495 = vunpack.c.l.b16 %v199
    %v496 = vunpack.c.l.b16 %v200
    %v497 = vunpack.c.l.b16 %v201
    %v498 = vunpack.c.l.b16 %v202
    %v499 = vunpack.c.l.b16 %v203
    %v500 = vunpack.c.l.b16 %v204
    %v501 = vunpack.c.l.b16 %v205
    %v502 = vunpack.c.l.b16 %v206
    %v503 = vunpack.c.l.b16 %v207
    %v504 = vunpack.c.l.b16 %v208
    %v505 = vunpack.c.l.b16 %v209
    %v506 = vunpack.c.l.b16 %v210
    %v507 = vunpack.c.l.b16 %v211
    %v508 = vunpack.c.l.b16 %v212
    %v509 = vunpack.c.l.b16 %v213
    %v510 = vunpack.c.l.b16 %v214
    %v511 = vpack.c.b16 %v384, %v383
    %v512 = vpack.c.b16 %v386, %v385
    %v513 = vpack.c.b16 %v388, %v387
    %v514 = vpack.c.b16 %v390, %v389
    %v515 = vpack.c.b16 %v392, %v391
    %v516 = vpack.c.b16 %v394, %v393
    %v517 = vpack.c.b16 %v396, %v395
    %v518 = vpack.c.b16 %v398, %v397
    %v519 = vpack.c.b16 %v400, %v399
    %v520 = vpack.c.b16 %v402, %v401
    %v521 = vpack.c.b16 %v404, %v403
    %v522 = vpack.c.b16 %v406, %v405
    %v523 = vpack.c.b16 %v408, %v407
    %v524 = vpack.c.b16 %v410, %v409
    %v525 = vpack.c.b16 %v412, %v411
    %v526 = vpack.c.b16 %v414, %v413
    %v527 = vpack.c.b16 %v416, %v415
    %v528 = vpack.c.b16 %v418, %v417
    %v529 = vpack.c.b16 %v420, %v419
    %v530 = vpack.c.b16 %v422, %v421
    %v531 = vpack.c.b16 %v424, %v423
    %v532 = vpack.c.b16 %v426, %v425
    %v533 = vpack.c.b16 %v428, %v427
    %v534 = vpack.c.b16 %v430, %v429
    %v535 = vpack.c.b16 %v432, %v431
    %v536 = vpack.c.b16 %v434, %v433
    %v537 = vpack.c.b16 %v436, %v435
    %v538 = vpack.c.b16 %v438, %v437
    %v539 = vpack.c.b16 %v440, %v439
    %v540 = vpack.c.b16 %v442, %v441
    %v541 = vpack.c.b16 %v444, %v443
    %v542 = vpack.c.b16 %v446, %v445
    %v543 = vpack.c.b16 %v448, %v447
    %v544 = vpack.c.b16 %v450, %v449
    %v545 = vpack.c.b16 %v452, %v451
    %v546 = vpack.c.b16 %v454, %v453
    %v547 = vpack.c.b16 %v456, %v455
    %v548 = vpack.c.b16 %v458, %v457
    %v549 = vpack.c.b16 %v460, %v459
    %v550 = vpack.c.b16 %v462, %v461
    %v551 = vpack.c.b16 %v464, %v463
    %v552 = vpack.c.b16 %v466, %v465
    %v553 = vpack.c.b16 %v468, %v467
    %v554 = vpack.c.b16 %v470, %v469
    %v555 = vpack.c.b16 %v472, %v471
    %v556 = vpack.c.b16 %v474, %v473
    %v557 = vpack.c.b16 %v476, %v475
    %v558 = vpack.c.b16 %v478, %v477
    %v559 = vpack.c.b16 %v480, %v479
    %v560 = vpack.c.b16 %v482, %v481
    %v561 = vpack.c.b16 %v484, %v483
    %v562 = vpack.c.b16 %v486, %v485
    %v563 = vpack.c.b16 %v488, %v487
    %v564 = vpack.c.b16 %v490, %v489
    %v565 = vpack.c.b16 %v492, %v491
    %v566 = vpack.c.b16 %v494, %v493
    %v567 = vpack.c.b16 %v496, %v495
    %v568 = vpack.c.b16 %v498, %v497
    %v569 = vpack.c.b16 %v500, %v499
    %v570 = vpack.c.b16 %v502, %v501
    %v571 = vpack.c.b16 %v504, %v503
    %v572 = vpack.c.b16 %v506, %v505
    %v573 = vpack.c.b16 %v508, %v507
    %v574 = vpack.c.b16 %v510, %v509
    %639 = vmatprep.subr.bf16.mxu0 0
    %640 = vmatpush1.bf16.msra.mxu0 %v518
    %641 = vmatprep.subr.bf16.mxu0 0
    %642 = vmatpush1.bf16.msra.mxu0 %v517
    %643 = vmatprep.subr.bf16.mxu0 0
    %644 = vmatpush1.bf16.msra.mxu0 %v516
    %645 = vmatprep.subr.bf16.mxu0 0
    %646 = vmatpush1.bf16.msra.mxu0 %v515
    %647 = vmatprep.subr.bf16.mxu0 0
    %648 = vmatpush1.bf16.msra.mxu0 %v514
    %649 = vmatprep.subr.bf16.mxu0 0
    %650 = vmatpush1.bf16.msra.mxu0 %v513
    %651 = vmatprep.subr.bf16.mxu0 0
    %652 = vmatpush1.bf16.msra.mxu0 %v512
    %653 = vmatprep.subr.bf16.mxu0 0
    %654 = vmatpush1.bf16.msra.mxu0 %v511
    %655 = vmatprep.subr.bf16.mxu0 0
    %656 = vmatpush2.bf16.msra.mxu0 %v526
    %657 = vmatprep.subr.bf16.mxu0 0
    %658 = vmatpush2.bf16.msra.mxu0 %v525
    %659 = vmatprep.subr.bf16.mxu0 0
    %660 = vmatpush2.bf16.msra.mxu0 %v524
    %661 = vmatprep.subr.bf16.mxu0 0
    %662 = vmatpush2.bf16.msra.mxu0 %v523
    %663 = vmatprep.subr.bf16.mxu0 0
    %664 = vmatpush2.bf16.msra.mxu0 %v522
    %665 = vmatprep.subr.bf16.mxu0 0
    %666 = vmatpush2.bf16.msra.mxu0 %v521
    %667 = vmatprep.subr.bf16.mxu0 0
    %668 = vmatpush2.bf16.msra.mxu0 %v520
    %669 = vmatprep.subr.bf16.mxu0 0
    %670 = vmatpush2.bf16.msra.mxu0 %v519
    %671 = vmatprep.mubr.bf16.mxu0 %v240
    %672 = vmatmul.mubr.bf16.gmra.mxu0 %v239
    %v673 = vpop.f32.mrf.mxu0
    %v674 = vadd.f32 0.0, %v673
    %v675 = vpop.f32.mrf.mxu0
    %v676 = vpop.f32.mrf.mxu0
    %v677 = vadd.f32 0.0, %v676
    %v678 = vpop.f32.mrf.mxu0
    %679 = vdwg.mxu0
    %680 = vmatprep.subr.bf16.mxu0 0
    %681 = vmatpush1.bf16.msra.mxu0 %v534
    %682 = vmatprep.subr.bf16.mxu0 0
    %683 = vmatpush1.bf16.msra.mxu0 %v533
    %684 = vmatprep.subr.bf16.mxu0 0
    %685 = vmatpush1.bf16.msra.mxu0 %v532
    %686 = vmatprep.subr.bf16.mxu0 0
    %687 = vmatpush1.bf16.msra.mxu0 %v531
    %688 = vmatprep.subr.bf16.mxu0 0
    %689 = vmatpush1.bf16.msra.mxu0 %v530
    %690 = vmatprep.subr.bf16.mxu0 0
    %691 = vmatpush1.bf16.msra.mxu0 %v529
    %692 = vmatprep.subr.bf16.mxu0 0
    %693 = vmatpush1.bf16.msra.mxu0 %v528
    %694 = vmatprep.subr.bf16.mxu0 0
    %695 = vmatpush1.bf16.msra.mxu0 %v527
    %696 = vmatprep.subr.bf16.mxu0 0
    %697 = vmatpush2.bf16.msra.mxu0 %v542
    %698 = vmatprep.subr.bf16.mxu0 0
    %699 = vmatpush2.bf16.msra.mxu0 %v541
    %700 = vmatprep.subr.bf16.mxu0 0
    %701 = vmatpush2.bf16.msra.mxu0 %v540
    %702 = vmatprep.subr.bf16.mxu0 0
    %703 = vmatpush2.bf16.msra.mxu0 %v539
    %704 = vmatprep.subr.bf16.mxu0 0
    %705 = vmatpush2.bf16.msra.mxu0 %v538
    %706 = vmatprep.subr.bf16.mxu0 0
    %707 = vmatpush2.bf16.msra.mxu0 %v537
    %708 = vmatprep.subr.bf16.mxu0 0
    %709 = vmatpush2.bf16.msra.mxu0 %v536
    %710 = vmatprep.subr.bf16.mxu0 0
    %711 = vmatpush2.bf16.msra.mxu0 %v535
    %712 = vmatprep.mubr.bf16.mxu0 %v242
    %713 = vmatmul.mubr.bf16.gmra.mxu0 %v241
    %v714 = vpop.f32.mrf.mxu0
    %v715 = vadd.f32 %v674, %v714
    %v716 = vpop.f32.mrf.mxu0
    %v717 = vpop.f32.mrf.mxu0
    %v718 = vadd.f32 %v677, %v717
    %v719 = vpop.f32.mrf.mxu0
    %720 = vdwg.mxu0
    %721 = vmatprep.subr.bf16.mxu0 0
    %722 = vmatpush1.bf16.msra.mxu0 %v550
    %723 = vmatprep.subr.bf16.mxu0 0
    %724 = vmatpush1.bf16.msra.mxu0 %v549
    %725 = vmatprep.subr.bf16.mxu0 0
    %726 = vmatpush1.bf16.msra.mxu0 %v548
    %727 = vmatprep.subr.bf16.mxu0 0
    %728 = vmatpush1.bf16.msra.mxu0 %v547
    %729 = vmatprep.subr.bf16.mxu0 0
    %730 = vmatpush1.bf16.msra.mxu0 %v546
    %731 = vmatprep.subr.bf16.mxu0 0
    %732 = vmatpush1.bf16.msra.mxu0 %v545
    %733 = vmatprep.subr.bf16.mxu0 0
    %734 = vmatpush1.bf16.msra.mxu0 %v544
    %735 = vmatprep.subr.bf16.mxu0 0
    %736 = vmatpush1.bf16.msra.mxu0 %v543
    %737 = vmatprep.subr.bf16.mxu0 0
    %738 = vmatpush2.bf16.msra.mxu0 %v558
    %739 = vmatprep.subr.bf16.mxu0 0
    %740 = vmatpush2.bf16.msra.mxu0 %v557
    %741 = vmatprep.subr.bf16.mxu0 0
    %742 = vmatpush2.bf16.msra.mxu0 %v556
    %743 = vmatprep.subr.bf16.mxu0 0
    %744 = vmatpush2.bf16.msra.mxu0 %v555
    %745 = vmatprep.subr.bf16.mxu0 0
    %746 = vmatpush2.bf16.msra.mxu0 %v554
    %747 = vmatprep.subr.bf16.mxu0 0
    %748 = vmatpush2.bf16.msra.mxu0 %v553
    %749 = vmatprep.subr.bf16.mxu0 0
    %750 = vmatpush2.bf16.msra.mxu0 %v552
    %751 = vmatprep.subr.bf16.mxu0 0
    %752 = vmatpush2.bf16.msra.mxu0 %v551
    %753 = vmatprep.mubr.bf16.mxu0 %v244
    %754 = vmatmul.mubr.bf16.gmra.mxu0 %v243
    %v755 = vpop.f32.mrf.mxu0
    %v756 = vadd.f32 %v715, %v755
    %v757 = vpop.f32.mrf.mxu0
    %v758 = vpop.f32.mrf.mxu0
    %v759 = vadd.f32 %v718, %v758
    %v760 = vpop.f32.mrf.mxu0
    %761 = vdwg.mxu0
    %762 = vmatprep.subr.bf16.mxu0 0
    %763 = vmatpush1.bf16.msra.mxu0 %v566
    %764 = vmatprep.subr.bf16.mxu0 0
    %765 = vmatpush1.bf16.msra.mxu0 %v565
    %766 = vmatprep.subr.bf16.mxu0 0
    %767 = vmatpush1.bf16.msra.mxu0 %v564
    %768 = vmatprep.subr.bf16.mxu0 0
    %769 = vmatpush1.bf16.msra.mxu0 %v563
    %770 = vmatprep.subr.bf16.mxu0 0
    %771 = vmatpush1.bf16.msra.mxu0 %v562
    %772 = vmatprep.subr.bf16.mxu0 0
    %773 = vmatpush1.bf16.msra.mxu0 %v561
    %774 = vmatprep.subr.bf16.mxu0 0
    %775 = vmatpush1.bf16.msra.mxu0 %v560
    %776 = vmatprep.subr.bf16.mxu0 0
    %777 = vmatpush1.bf16.msra.mxu0 %v559
    %778 = vmatprep.subr.bf16.mxu0 0
    %779 = vmatpush2.bf16.msra.mxu0 %v574
    %780 = vmatprep.subr.bf16.mxu0 0
    %781 = vmatpush2.bf16.msra.mxu0 %v573
    %782 = vmatprep.subr.bf16.mxu0 0
    %783 = vmatpush2.bf16.msra.mxu0 %v572
    %784 = vmatprep.subr.bf16.mxu0 0
    %785 = vmatpush2.bf16.msra.mxu0 %v571
    %786 = vmatprep.subr.bf16.mxu0 0
    %787 = vmatpush2.bf16.msra.mxu0 %v570
    %788 = vmatprep.subr.bf16.mxu0 0
    %789 = vmatpush2.bf16.msra.mxu0 %v569
    %790 = vmatprep.subr.bf16.mxu0 0
    %791 = vmatpush2.bf16.msra.mxu0 %v568
    %792 = vmatprep.subr.bf16.mxu0 0
    %793 = vmatpush2.bf16.msra.mxu0 %v567
    %794 = vmatprep.mubr.bf16.mxu0 %v246
    %795 = vmatmul.mubr.bf16.gmra.mxu0 %v245
    %v796 = vpop.f32.mrf.mxu0
    %v797 = vadd.f32 %v756, %v796
    %v798 = vpop.f32.mrf.mxu0
    %v799 = vpop.f32.mrf.mxu0
    %v800 = vadd.f32 %v759, %v799
    %v801 = vpop.f32.mrf.mxu0
    %802 = vdwg.mxu0
    %v803 = vadd.f32 %v77, %v797
    %v804 = vadd.f32 %v78, %v800
    %805 = vst [vmem:[#allocation2] sm:$0xff] %v803
    %806 = vst [vmem:[#allocation2 + $0x8] sm:$0xff] %v804
    // Predicated region
    $region30: #{multi_head_image_classifier.1} parent=1 // pred_check
      %p807 = pneg %p71
    $region31: #{multi_head_image_classifier.1} parent=1 // pred_check_branch
      %809 = sbr.rel (%p807) target = $region33
    $region32: #{multi_head_image_classifier.1} parent=1 // pred_region
      %v810 = vld [vmem:[#allocation2] sm:$0xff]
      %v811 = vld [vmem:[#allocation2 + $0x8] sm:$0xff]
      %v812 = vld [vmem:[%s3] sm:$0x1]
      %v814 = vlaneseq
      %v815 = vshrl.u32 %v814, 7
      %v816 = vsub.s32 0, %v815
      %v817 = vrot.slane %v812, %v816
      %v819 = vadd.f32 %v810, %v817
      %v820 = vadd.f32 %v811, %v817
      %v821 = vmul.f32 %v819, %v819
      %v822 = vmul.f32 %v820, %v820
      %v823 = vmul.f32 %v819, %v821
      %v824 = vmul.f32 %v820, %v822
      %v825 = vmul.f32 %v823, 0.044715
      %v826 = vmul.f32 %v824, 0.044715
      %v827 = vadd.f32 %v819, %v825
      %v828 = vadd.f32 %v820, %v826
      %v829 = vmul.f32 %v827, 0.7978846
      %v830 = vmul.f32 %v828, 0.7978846
      %v831 = vtanh.pop %v829
      %v832 = vtanh.pop %v830
      %v833 = vadd.f32 %v831, 1.0
      %v834 = vadd.f32 %v832, 1.0
      %v835 = vmul.f32 %v833, 0.5
      %v836 = vmul.f32 %v834, 0.5
      %v837 = vmul.f32 %v819, %v835
      %v838 = vmul.f32 %v820, %v836
      %v839 = vpack.c.bf16 %v838, %v837
      %v840 = vld [vmem:[%s63] sm:$0xf]
      %v841 = vld [vmem:[%s63 + $0x4] sm:$0xf]
      %v842 = vld [vmem:[%s63 + $0x8] sm:$0xf]
      %v843 = vld [vmem:[%s63 + $0xc] sm:$0xf]
      %v844 = vld [vmem:[%s63 + $0x10] sm:$0xf]
      %v845 = vld [vmem:[%s63 + $0x14] sm:$0xf]
      %v846 = vld [vmem:[%s63 + $0x18] sm:$0xf]
      %v847 = vld [vmem:[%s63 + $0x1c] sm:$0xf]
      %v848 = vld [vmem:[%s63 + $0x20] sm:$0xf]
      %v849 = vld [vmem:[%s63 + $0x24] sm:$0xf]
      %v850 = vld [vmem:[%s63 + $0x28] sm:$0xf]
      %v851 = vld [vmem:[%s63 + $0x2c] sm:$0xf]
      %v852 = vld [vmem:[%s63 + $0x30] sm:$0xf]
      %v853 = vld [vmem:[%s63 + $0x34] sm:$0xf]
      %v854 = vld [vmem:[%s63 + $0x38] sm:$0xf]
      %v855 = vld [vmem:[%s63 + $0x3c] sm:$0xf]
      %v856 = vld [vmem:[%s68] sm:$0x1]
      %v858 = vlaneseq
      %v859 = vshrl.u32 %v858, 7
      %v860 = vsub.s32 0, %v859
      %v861 = vrot.slane %v856, %v860
      %v879 = vunpack.c.l.b16 %v840
      %v880 = vunpack.c.l.b16 %v841
      %v881 = vunpack.c.l.b16 %v842
      %v882 = vunpack.c.l.b16 %v843
      %v883 = vunpack.c.l.b16 %v844
      %v884 = vunpack.c.l.b16 %v845
      %v885 = vunpack.c.l.b16 %v846
      %v886 = vunpack.c.l.b16 %v847
      %v887 = vunpack.c.l.b16 %v848
      %v888 = vunpack.c.l.b16 %v849
      %v889 = vunpack.c.l.b16 %v850
      %v890 = vunpack.c.l.b16 %v851
      %v891 = vunpack.c.l.b16 %v852
      %v892 = vunpack.c.l.b16 %v853
      %v893 = vunpack.c.l.b16 %v854
      %v894 = vunpack.c.l.b16 %v855
      %v895 = vpack.c.b16 %v880, %v879
      %v896 = vpack.c.b16 %v882, %v881
      %v897 = vpack.c.b16 %v884, %v883
      %v898 = vpack.c.b16 %v886, %v885
      %v899 = vpack.c.b16 %v888, %v887
      %v900 = vpack.c.b16 %v890, %v889
      %v901 = vpack.c.b16 %v892, %v891
      %v902 = vpack.c.b16 %v894, %v893
      %911 = vmatprep.subr.bf16.mxu0 0
      %912 = vmatpush1.bf16.msra.mxu0 %v902
      %913 = vmatprep.subr.bf16.mxu0 0
      %914 = vmatpush1.bf16.msra.mxu0 %v901
      %915 = vmatprep.subr.bf16.mxu0 0
      %916 = vmatpush1.bf16.msra.mxu0 %v900
      %917 = vmatprep.subr.bf16.mxu0 0
      %918 = vmatpush1.bf16.msra.mxu0 %v899
      %919 = vmatprep.subr.bf16.mxu0 0
      %920 = vmatpush1.bf16.msra.mxu0 %v898
      %921 = vmatprep.subr.bf16.mxu0 0
      %922 = vmatpush1.bf16.msra.mxu0 %v897
      %923 = vmatprep.subr.bf16.mxu0 0
      %924 = vmatpush1.bf16.msra.mxu0 %v896
      %925 = vmatprep.subr.bf16.mxu0 0
      %926 = vmatpush1.bf16.msra.mxu0 %v895
      %927 = vmatprep.subr.bf16.mxu0 0
      %928 = vmatpush2.bf16.msra.mxu0 0
      %929 = vmatprep.subr.bf16.mxu0 0
      %930 = vmatpush2.bf16.msra.mxu0 0
      %931 = vmatprep.subr.bf16.mxu0 0
      %932 = vmatpush2.bf16.msra.mxu0 0
      %933 = vmatprep.subr.bf16.mxu0 0
      %934 = vmatpush2.bf16.msra.mxu0 0
      %935 = vmatprep.subr.bf16.mxu0 0
      %936 = vmatpush2.bf16.msra.mxu0 0
      %937 = vmatprep.subr.bf16.mxu0 0
      %938 = vmatpush2.bf16.msra.mxu0 0
      %939 = vmatprep.subr.bf16.mxu0 0
      %940 = vmatpush2.bf16.msra.mxu0 0
      %941 = vmatprep.subr.bf16.mxu0 0
      %942 = vmatpush2.bf16.msra.mxu0 0
      %943 = vmatprep.mubr.bf16.mxu0 0
      %944 = vmatmul.mubr.bf16.gmra.mxu0 %v839
      %v945 = vpop.f32.mrf.mxu0
      %v946 = vadd.f32 %v861, %v945
      %v947 = vpop.f32.mrf.mxu0
      %v948 = vpop.f32.mrf.mxu0
      %v949 = vadd.f32 %v861, %v948
      %v950 = vpop.f32.mrf.mxu0
      %951 = vdwg.mxu0
      %952 = vst [vmem:[%s6] sm:$0xff] %v946
      %953 = vst [vmem:[%s6 + $0x8] sm:$0xff] %v949
    $region33: #{multi_head_image_classifier.1} parent=1 // pred_fallthru
      _
    // Predicated region
    $region34: #{multi_head_image_classifier.1} parent=1 // pred_check
      _
    $region35: #{multi_head_image_classifier.1} parent=1 // pred_check_branch
      %955 = sbr.rel (0) target = $region37
    $region36: #{multi_head_image_classifier.1} parent=1 // pred_region
      _
    $region37: #{multi_head_image_classifier.1} parent=1 // pred_fallthru
      _
    // Predicated region
    $region38: #{multi_head_image_classifier.1} parent=1 // pred_check
      _
    $region39: #{multi_head_image_classifier.1} parent=1 // pred_check_branch
      %957 = sbr.rel (0) target = $region41
    $region40: #{multi_head_image_classifier.1} parent=1 // pred_region
      _
    $region41: #{multi_head_image_classifier.1} parent=1 // pred_fallthru
      _
    %958 = vsyncpa [#allocation6], 1

</llo_original>
